<compile_context>
chip_gen: v7x
topology: tpu7x:2x2x1
jax: 0.10.0
libtpu: 0.0.40
codegen_flags: <defaults>
</compile_context>

<pallas_src>
import functools

import jax
import jax.numpy as jnp
from jax.experimental import pallas as pl
from jax.experimental.pallas import tpu as pltpu

FEATURE_LOSS_WEIGHT = 1.0
ATTENTION_LOSS_WEIGHT = 0.5   # unused by forward (kept for parity with the module)
TEMPERATURE = 4.0             # unused by forward (kept for parity with the module)

NORMALIZE_EPS = 1e-12     # F.normalize default: x / max(||x||, eps)
COSINE_EMBED_EPS = 1e-12  # ATen cosine_embedding_loss: (||x||^2 + eps) per input

_D_CHUNK_LANES = 512      # f32 working-set chunk along the feature axis (mult of 128)
_MAX_TILE_ROWS = 2048


def _round_up(x, m):
    return ((x + m - 1) // m) * m


def _cdiv(a, b):
    return (a + b - 1) // b


def _vmem_capacity_bytes():
    """Per-core VMEM capacity; conservative fallback if the query is unavailable."""
    try:
        cap = int(pltpu.get_tpu_info().vmem_capacity_bytes)
        if cap > 0:
            return cap
    except Exception:
        pass
    return 64 << 20   # v7x per-TensorCore size (smallest of v5e/v6e/v7x)


def _choose_tile_rows(batch, feat_dim, in_itemsize, d_chunk):
    """Largest multiple-of-8 row tile fitting ~half of VMEM.

    Counts 3 inputs x 2 pipeline buffers in the HBM dtype PLUS the live in-kernel
    f32 working set (3 chunk-wide casts + fused product temporaries).
    """
    budget = _vmem_capacity_bytes() // 2
    bytes_per_row = 3 * 2 * feat_dim * in_itemsize + 6 * d_chunk * 4
    max_tm = budget // bytes_per_row
    tm = max(8, min(_MAX_TILE_ROWS, (max_tm // 8) * 8))
    tm = min(tm, _round_up(batch, 8))
    # Ensure >= 2 grid steps when the batch allows, so the "parallel" grid axis can
    # be sharded across both TensorCores on v7x (negligible cost on v5e/v6e).
    if batch > 8 and _cdiv(batch, tm) < 2:
        tm = max(8, _round_up(_cdiv(batch, 2), 8))
    return tm


def _distill_kernel(sp_ref, sf_ref, tf_ref, out_ref, *,
                    batch_size, tile_rows, d_chunk, has_tail):
    """Per-tile partial sums, packed lane-dense into one (8, 128) block:
       [0, 0] = feature-MSE numerator partial, [0, 1] = sum(1 - cos) partial."""
    pid = pl.program_id(0)
    tm, feat_dim = sp_ref.shape

    # Five row-wise dot products, accumulated over static lane chunks so only one
    # chunk of f32 intermediates is live at a time (bounds VMEM for bf16 inputs).
    # No (tm, D) normalized temporaries are ever materialized.
    sp_sp = jnp.zeros((tm, 1), jnp.float32)
    tf_tf = jnp.zeros((tm, 1), jnp.float32)
    sp_tf = jnp.zeros((tm, 1), jnp.float32)
    sf_sf = jnp.zeros((tm, 1), jnp.float32)
    sf_tf = jnp.zeros((tm, 1), jnp.float32)
    for c0 in range(0, feat_dim, d_chunk):
        c1 = min(c0 + d_chunk, feat_dim)
        sp = sp_ref[:, c0:c1].astype(jnp.float32)   # student projected features
        sf = sf_ref[:, c0:c1].astype(jnp.float32)   # student features
        tf = tf_ref[:, c0:c1].astype(jnp.float32)   # teacher features
        sp_sp = sp_sp + jnp.sum(sp * sp, axis=-1, keepdims=True)
        tf_tf = tf_tf + jnp.sum(tf * tf, axis=-1, keepdims=True)
        sp_tf = sp_tf + jnp.sum(sp * tf, axis=-1, keepdims=True)
        sf_sf = sf_sf + jnp.sum(sf * sf, axis=-1, keepdims=True)
        sf_tf = sf_tf + jnp.sum(sf * tf, axis=-1, keepdims=True)

    # ---- feature MSE numerator: ||normalize(sp) - normalize(tf)||^2 per row ----
    # F.normalize clamps each norm: max(||x||, eps)^2 == max(||x||^2, eps^2).
    # rsqrt runs on the EUP slot (free vs. VALU).
    eps2 = jnp.float32(NORMALIZE_EPS * NORMALIZE_EPS)
    inv_sp = jax.lax.rsqrt(jnp.maximum(sp_sp, eps2))
    inv_tf = jax.lax.rsqrt(jnp.maximum(tf_tf, eps2))
    feat_row = (sp_sp * inv_sp * inv_sp
                + tf_tf * inv_tf * inv_tf
                - 2.0 * sp_tf * inv_sp * inv_tf)             # (tm, 1)

    # ---- CosineEmbeddingLoss (target = +1), ATen convention ----
    ceps = jnp.float32(COSINE_EMBED_EPS)
    cos_row = 1.0 - sf_tf * jax.lax.rsqrt((sf_sf + ceps) * (tf_tf + ceps))   # (tm, 1)

    def _emit(f_row, c_row):
        feat_part = jnp.sum(f_row)
        cos_part = jnp.sum(c_row)
        sub = jax.lax.broadcasted_iota(jnp.int32, (8, 128), 0)
        lane = jax.lax.broadcasted_iota(jnp.int32, (8, 128), 1)
        out_ref[...] = jnp.where((sub == 0) & (lane == 0), feat_part,
                                 jnp.where((sub == 0) & (lane == 1), cos_part, 0.0))

    if not has_tail:
        # Batch divides the tile size: no masking anywhere.
        _emit(feat_row, cos_row)
    else:
        last = pl.num_programs(0) - 1

        @pl.when(pid != last)
        def _():
            _emit(feat_row, cos_row)

        @pl.when(pid == last)
        def _():
            # Ragged last block: rows past the real batch hold unspecified data;
            # use a select (not a multiply) so NaN/Inf garbage cannot leak in.
            row = jax.lax.broadcasted_iota(jnp.int32, (tm, 1), 0) + pid * tile_rows
            valid = row < batch_size
            _emit(jnp.where(valid, feat_row, 0.0),
                  jnp.where(valid, cos_row, 0.0))


def distillation_loss(student_outputs, teacher_outputs,
                      feature_loss_weight=FEATURE_LOSS_WEIGHT):
    """Pallas equivalent of DistillationLoss.forward.

    student_outputs: {'projected_features': (B, D), 'features': (B, D)}
    teacher_outputs: {'features': (B, D)}
    Returns dict of scalar losses (feature_loss, cosine_loss, total_loss).
    """
    sp = student_outputs['projected_features']
    sf = student_outputs['features']
    tf = teacher_outputs['features']
    assert sp.ndim == 2 and sp.shape == sf.shape == tf.shape
    B, D = sp.shape

    in_itemsize = jnp.dtype(sp.dtype).itemsize
    d_chunk = min(_round_up(D, 128), _D_CHUNK_LANES)
    tm = _choose_tile_rows(B, D, in_itemsize, d_chunk)
    num_tiles = _cdiv(B, tm)
    has_tail = (B % tm) != 0
    # TODO(synk): for extremely wide features where even an 8-row (tm, D) block
    # exceeds the VMEM budget, add a second "arbitrary" grid axis over D chunks.

    capacity = _vmem_capacity_bytes()
    estimate = 3 * 2 * tm * D * in_itemsize + 6 * tm * d_chunk * 4 + (1 << 20)
    vmem_limit = int(min(max(2 * estimate, 32 << 20), capacity * 7 // 8))

    kernel = functools.partial(_distill_kernel, batch_size=B, tile_rows=tm,
                               d_chunk=d_chunk, has_tail=has_tail)

    in_spec = pl.BlockSpec((tm, D), lambda i: (i, 0))
    # Leading block dim squeezed -> kernel writes a lane-dense (8, 128) block.
    out_spec = pl.BlockSpec((None, 8, 128), lambda i: (i, 0, 0))

    partials = pl.pallas_call(
        kernel,
        out_shape=jax.ShapeDtypeStruct((num_tiles, 8, 128), jnp.float32),
        grid=(num_tiles,),
        in_specs=[in_spec, in_spec, in_spec],
        out_specs=out_spec,
        compiler_params=pltpu.CompilerParams(
            dimension_semantics=("parallel",),
            vmem_limit_bytes=vmem_limit,
        ),
    )(sp, sf, tf)

    # Tiny final reduction + loss weighting in plain JAX (a handful of floats).
    feat_sum = jnp.sum(partials[:, 0, 0])
    cos_sum = jnp.sum(partials[:, 0, 1])
    feature_loss = feat_sum / jnp.float32(B * D)
    cosine_loss = cos_sum / jnp.float32(B)
    total_loss = feature_loss_weight * feature_loss + 0.5 * cosine_loss

    return {
        'feature_loss': feature_loss,
        'cosine_loss': cosine_loss,
        'total_loss': total_loss,
    }


def _reference(student_outputs, teacher_outputs):
    sp = student_outputs['projected_features'].astype(jnp.float32)
    sf = student_outputs['features'].astype(jnp.float32)
    tf = teacher_outputs['features'].astype(jnp.float32)
    sn = sp / jnp.maximum(jnp.linalg.norm(sp, axis=-1, keepdims=True), NORMALIZE_EPS)
    tn = tf / jnp.maximum(jnp.linalg.norm(tf, axis=-1, keepdims=True), NORMALIZE_EPS)
    feature_loss = jnp.mean((sn - tn) ** 2)
    cos = jnp.sum(sf * tf, axis=-1) / jnp.sqrt(
        (jnp.sum(sf * sf, axis=-1) + COSINE_EMBED_EPS)
        * (jnp.sum(tf * tf, axis=-1) + COSINE_EMBED_EPS))
    cosine_loss = jnp.mean(1.0 - cos)
    total = FEATURE_LOSS_WEIGHT * feature_loss + 0.5 * cosine_loss
    return feature_loss, cosine_loss, total


def _run_case(key, B, D, dtype=jnp.float32, atol=1e-5, rtol=1e-5):
    k1, k2, k3 = jax.random.split(key, 3)
    student_outputs = {
        'projected_features': jax.random.normal(k1, (B, D), dtype=jnp.float32).astype(dtype),
        'features': jax.random.normal(k2, (B, D), dtype=jnp.float32).astype(dtype),
    }
    teacher_outputs = {
        'features': jax.random.normal(k3, (B, D), dtype=jnp.float32).astype(dtype),
    }
    losses = distillation_loss(student_outputs, teacher_outputs)
    jax.block_until_ready(losses['total_loss'])

    ref_feat, ref_cos, ref_total = _reference(student_outputs, teacher_outputs)
    assert jnp.allclose(losses['feature_loss'], ref_feat, atol=atol, rtol=rtol), \
        (losses['feature_loss'], ref_feat)
    assert jnp.allclose(losses['cosine_loss'], ref_cos, atol=atol, rtol=rtol), \
        (losses['cosine_loss'], ref_cos)
    assert jnp.allclose(losses['total_loss'], ref_total, atol=atol, rtol=rtol), \
        (losses['total_loss'], ref_total)


if __name__ == "__main__":
    key = jax.random.PRNGKey(0)
    k_a, k_b, k_c, k_d = jax.random.split(key, 4)

    # Single tile, lane-aligned.
    _run_case(k_a, B=8, D=256)
    # Batch not a multiple of the tile size -> ragged last block + row mask.
    _run_case(k_b, B=10, D=128)
    # >= 2 tiles (TC sharding path) + two feature chunks (D > 512) + ragged tail.
    _run_case(k_c, B=24, D=640)
    # bf16 inputs exercise the in-kernel f32 cast path.
    _run_case(k_d, B=16, D=256, dtype=jnp.bfloat16, atol=1e-4, rtol=1e-4)

    print("KERNEL_OK")
</pallas_src>

<mosaic_0001>
module attributes {stable_mosaic.version = 11 : i64} {
  func.func @_distill_kernel(%arg0: i32, %arg1: memref<8x256xf32, #tpu.memory_space<vmem>>, %arg2: memref<8x256xf32, #tpu.memory_space<vmem>>, %arg3: memref<8x256xf32, #tpu.memory_space<vmem>>, %arg4: memref<1x8x128xf32, #tpu.memory_space<vmem>>) attributes {dimension_semantics = [#tpu.dimension_semantics<parallel>], iteration_bounds = array<i64: 1>, scalar_prefetch = 0 : i64, scratch_operands = 0 : i64, tpu.core_type = #tpu.core_type<tc>, window_params = [{transform_indices = @transform_0, window_bounds = array<i64: 8, 256>}, {transform_indices = @transform_1, window_bounds = array<i64: 8, 256>}, {transform_indices = @transform_2, window_bounds = array<i64: 8, 256>}, {transform_indices = @transform_3, window_bounds = array<i64: 1, 8, 128>}]} {
    %cst = arith.constant 0.000000e+00 : f32
    %0 = vector.broadcast %cst : f32 to vector<8x1xf32>
    %cst_0 = arith.constant 0.000000e+00 : f32
    %1 = vector.broadcast %cst_0 : f32 to vector<8x1xf32>
    %cst_1 = arith.constant 0.000000e+00 : f32
    %2 = vector.broadcast %cst_1 : f32 to vector<8x1xf32>
    %cst_2 = arith.constant 0.000000e+00 : f32
    %3 = vector.broadcast %cst_2 : f32 to vector<8x1xf32>
    %cst_3 = arith.constant 0.000000e+00 : f32
    %4 = vector.broadcast %cst_3 : f32 to vector<8x1xf32>
    %c0 = arith.constant 0 : index
    %c0_4 = arith.constant 0 : index
    %5 = vector.load %arg1[%c0, %c0_4] : memref<8x256xf32, #tpu.memory_space<vmem>>, vector<8x256xf32>
    %c0_5 = arith.constant 0 : index
    %c0_6 = arith.constant 0 : index
    %6 = vector.load %arg2[%c0_5, %c0_6] : memref<8x256xf32, #tpu.memory_space<vmem>>, vector<8x256xf32>
    %c0_7 = arith.constant 0 : index
    %c0_8 = arith.constant 0 : index
    %7 = vector.load %arg3[%c0_7, %c0_8] : memref<8x256xf32, #tpu.memory_space<vmem>>, vector<8x256xf32>
    %8 = arith.mulf %5, %5 : vector<8x256xf32>
    %cst_9 = arith.constant dense<0.000000e+00> : vector<8xf32>
    %9 = vector.multi_reduction <add>, %8, %cst_9 [1] : vector<8x256xf32> to vector<8xf32>
    %10 = vector.shape_cast %9 : vector<8xf32> to vector<8x1xf32>
    %11 = arith.addf %0, %10 : vector<8x1xf32>
    %12 = arith.mulf %7, %7 : vector<8x256xf32>
    %cst_10 = arith.constant dense<0.000000e+00> : vector<8xf32>
    %13 = vector.multi_reduction <add>, %12, %cst_10 [1] : vector<8x256xf32> to vector<8xf32>
    %14 = vector.shape_cast %13 : vector<8xf32> to vector<8x1xf32>
    %15 = arith.addf %1, %14 : vector<8x1xf32>
    %16 = arith.mulf %5, %7 : vector<8x256xf32>
    %cst_11 = arith.constant dense<0.000000e+00> : vector<8xf32>
    %17 = vector.multi_reduction <add>, %16, %cst_11 [1] : vector<8x256xf32> to vector<8xf32>
    %18 = vector.shape_cast %17 : vector<8xf32> to vector<8x1xf32>
    %19 = arith.addf %2, %18 : vector<8x1xf32>
    %20 = arith.mulf %6, %6 : vector<8x256xf32>
    %cst_12 = arith.constant dense<0.000000e+00> : vector<8xf32>
    %21 = vector.multi_reduction <add>, %20, %cst_12 [1] : vector<8x256xf32> to vector<8xf32>
    %22 = vector.shape_cast %21 : vector<8xf32> to vector<8x1xf32>
    %23 = arith.addf %3, %22 : vector<8x1xf32>
    %24 = arith.mulf %6, %7 : vector<8x256xf32>
    %cst_13 = arith.constant dense<0.000000e+00> : vector<8xf32>
    %25 = vector.multi_reduction <add>, %24, %cst_13 [1] : vector<8x256xf32> to vector<8xf32>
    %26 = vector.shape_cast %25 : vector<8xf32> to vector<8x1xf32>
    %27 = arith.addf %4, %26 : vector<8x1xf32>
    %cst_14 = arith.constant 1.000000e-24 : f32
    %28 = vector.broadcast %cst_14 : f32 to vector<8x1xf32>
    %29 = arith.maximumf %11, %28 : vector<8x1xf32>
    %30 = math.rsqrt %29 : vector<8x1xf32>
    %cst_15 = arith.constant 1.000000e-24 : f32
    %31 = vector.broadcast %cst_15 : f32 to vector<8x1xf32>
    %32 = arith.maximumf %15, %31 : vector<8x1xf32>
    %33 = math.rsqrt %32 : vector<8x1xf32>
    %34 = arith.mulf %11, %30 : vector<8x1xf32>
    %35 = arith.mulf %34, %30 : vector<8x1xf32>
    %36 = arith.mulf %15, %33 : vector<8x1xf32>
    %37 = arith.mulf %36, %33 : vector<8x1xf32>
    %38 = arith.addf %35, %37 : vector<8x1xf32>
    %cst_16 = arith.constant 2.000000e+00 : f32
    %39 = vector.broadcast %cst_16 : f32 to vector<8x1xf32>
    %40 = arith.mulf %39, %19 : vector<8x1xf32>
    %41 = arith.mulf %40, %30 : vector<8x1xf32>
    %42 = arith.mulf %41, %33 : vector<8x1xf32>
    %43 = arith.subf %38, %42 : vector<8x1xf32>
    %cst_17 = arith.constant 9.99999996E-13 : f32
    %44 = vector.broadcast %cst_17 : f32 to vector<8x1xf32>
    %45 = arith.addf %23, %44 : vector<8x1xf32>
    %cst_18 = arith.constant 9.99999996E-13 : f32
    %46 = vector.broadcast %cst_18 : f32 to vector<8x1xf32>
    %47 = arith.addf %15, %46 : vector<8x1xf32>
    %48 = arith.mulf %45, %47 : vector<8x1xf32>
    %49 = math.rsqrt %48 : vector<8x1xf32>
    %50 = arith.mulf %27, %49 : vector<8x1xf32>
    %cst_19 = arith.constant 1.000000e+00 : f32
    %51 = vector.broadcast %cst_19 : f32 to vector<8x1xf32>
    %52 = arith.subf %51, %50 : vector<8x1xf32>
    %53 = vector.shape_cast %43 : vector<8x1xf32> to vector<1x8x1xf32>
    %cst_20 = arith.constant dense<0.000000e+00> : vector<1xf32>
    %54 = vector.multi_reduction <add>, %53, %cst_20 [1, 2] : vector<1x8x1xf32> to vector<1xf32>
    %55 = vector.shape_cast %54 : vector<1xf32> to vector<1x1x1xf32>
    %56 = vector.extract %55[0, 0, 0] : f32 from vector<1x1x1xf32>
    %57 = vector.shape_cast %52 : vector<8x1xf32> to vector<1x8x1xf32>
    %cst_21 = arith.constant dense<0.000000e+00> : vector<1xf32>
    %58 = vector.multi_reduction <add>, %57, %cst_21 [1, 2] : vector<1x8x1xf32> to vector<1xf32>
    %59 = vector.shape_cast %58 : vector<1xf32> to vector<1x1x1xf32>
    %60 = vector.extract %59[0, 0, 0] : f32 from vector<1x1x1xf32>
    %61 = tpu.iota {dimensions = array<i32: 0>} : vector<8x128xi32>
    %62 = tpu.iota {dimensions = array<i32: 1>} : vector<8x128xi32>
    %c0_i32 = arith.constant 0 : i32
    %63 = vector.broadcast %c0_i32 : i32 to vector<8x128xi32>
    %64 = arith.cmpi eq, %61, %63 : vector<8x128xi32>
    %c0_i32_22 = arith.constant 0 : i32
    %65 = vector.broadcast %c0_i32_22 : i32 to vector<8x128xi32>
    %66 = arith.cmpi eq, %62, %65 : vector<8x128xi32>
    %67 = arith.andi %64, %66 : vector<8x128xi1>
    %c0_i32_23 = arith.constant 0 : i32
    %68 = vector.broadcast %c0_i32_23 : i32 to vector<8x128xi32>
    %69 = arith.cmpi eq, %61, %68 : vector<8x128xi32>
    %c1_i32 = arith.constant 1 : i32
    %70 = vector.broadcast %c1_i32 : i32 to vector<8x128xi32>
    %71 = arith.cmpi eq, %62, %70 : vector<8x128xi32>
    %72 = arith.andi %69, %71 : vector<8x128xi1>
    %cst_24 = arith.constant 0.000000e+00 : f32
    %73 = vector.broadcast %60 : f32 to vector<8x128xf32>
    %74 = vector.broadcast %cst_24 : f32 to vector<8x128xf32>
    %75 = arith.select %72, %73, %74 : vector<8x128xi1>, vector<8x128xf32>
    %76 = vector.broadcast %56 : f32 to vector<8x128xf32>
    %77 = arith.select %67, %76, %75 : vector<8x128xi1>, vector<8x128xf32>
    %c0_25 = arith.constant 0 : index
    %c0_26 = arith.constant 0 : index
    %c0_27 = arith.constant 0 : index
    %78 = vector.load %arg4[%c0_25, %c0_26, %c0_27] : memref<1x8x128xf32, #tpu.memory_space<vmem>>, vector<1x8x128xf32>
    %79 = vector.shape_cast %78 : vector<1x8x128xf32> to vector<8x128xf32>
    %80 = vector.shape_cast %77 : vector<8x128xf32> to vector<1x8x128xf32>
    tpu.vector_store %arg4[%c0_25, %c0_26, %c0_27], %80 {strides = array<i32>} : memref<1x8x128xf32, #tpu.memory_space<vmem>>, vector<1x8x128xf32>,
    return
  }
  func.func @transform_0(%arg0: i32) -> (i32, i32) {
    %c0_i32 = arith.constant 0 : i32
    %c0_i32_0 = arith.constant 0 : i32
    return %arg0, %c0_i32 : i32, i32
  }
  func.func @transform_1(%arg0: i32) -> (i32, i32) {
    %c0_i32 = arith.constant 0 : i32
    %c0_i32_0 = arith.constant 0 : i32
    return %arg0, %c0_i32 : i32, i32
  }
  func.func @transform_2(%arg0: i32) -> (i32, i32) {
    %c0_i32 = arith.constant 0 : i32
    %c0_i32_0 = arith.constant 0 : i32
    return %arg0, %c0_i32 : i32, i32
  }
  func.func @transform_3(%arg0: i32) -> (i32, i32, i32) {
    %c0_i32 = arith.constant 0 : i32
    %c0_i32_0 = arith.constant 0 : i32
    %c0_i32_1 = arith.constant 0 : i32
    return %arg0, %c0_i32, %c0_i32_0 : i32, i32, i32
  }
}

</mosaic_0001>

<llo_original>
// kernel: tpu_custom_call.1
$region0: #{tpu_custom_call.1}
  #allocation0 [shape = 'u32[]', space=smem, size = 0x4, offset = 0x4, fixed_abs, tag = 'smem constant byte address 0x4 - core index']
  #allocation1 [shape = 'u32[144,128]{1,0:T(1,128)}', space=vmem, size = 0x12000, scoped, tag = 'internal scratch']
  %s0 = inlined_call_operand.hbm [shape: f32[8,256], index: 0, kind: input, shape index: {}]
  %s1 = inlined_call_operand.hbm [shape: f32[8,256], index: 1, kind: input, shape index: {}]
  %s2 = inlined_call_operand.hbm [shape: f32[8,256], index: 2, kind: input, shape index: {}]
  %s3 = inlined_call_operand.hbm [shape: f32[1,8,128], index: 3, kind: output, shape index: {}]
  %s4 = sld [smem:[#allocation0]]
  $region34: #{tpu_custom_call.1} parent=0
    _
  %s6 = ssub.s32 1, %s4
  %s7 = scalar_select 0, %s6, %s4
  $region1: #{tpu_custom_call.1} parent=0
    #allocation2 [shape = 'u8[8192]{0}', space=vmem, size = 0x2000, scoped, tag = 'input window, operand 0, single buffered']
    #allocation3 [shape = 's32[1]{0}', space=sflag, size = 0x4, scoped, tag = 'scoped memory for tpu_custom_call.1']
    #allocation4 [shape = 's32[1]{0}', space=sflag, size = 0x4, scoped, tag = 'scoped memory for tpu_custom_call.1']
    #allocation5 [shape = 'u8[8192]{0}', space=vmem, size = 0x2000, scoped, tag = 'input window, operand 1, single buffered']
    #allocation6 [shape = 's32[1]{0}', space=sflag, size = 0x4, scoped, tag = 'scoped memory for tpu_custom_call.1']
    #allocation7 [shape = 'u8[8192]{0}', space=vmem, size = 0x2000, scoped, tag = 'input window, operand 2, single buffered']
    #allocation8 [shape = 'u8[4096]{0}', space=vmem, size = 0x1000, scoped, tag = 'output window, operand 0, single buffered']
    %8 = vsyncpa [#allocation3], 0
    %9 = vsyncpa [#allocation6], 0
    %10 = vsyncpa [#allocation4], 0
    // Predicated region
    $region2: #{tpu_custom_call.1} parent=1 // pred_check
      _
    $region3: #{tpu_custom_call.1} parent=1 // pred_check_branch
      %12 = sbr.rel (0) target = $region5
    $region4: #{tpu_custom_call.1} parent=1 // pred_region
      %s14 = ssub.s32 256, 256
      %15 = vsyncadd [#allocation3], %s14
      %s17 = sshll.u32 [#allocation2], 4
      %s18 = int_to_ptr.vmem [resolvable:$true] %s17
      %20 = dma.hbm_to_vmem [thread:$0]  %s0, 256, %s18, [#allocation3]
    $region5: #{tpu_custom_call.1} parent=1 // pred_fallthru
      _
    // Predicated region
    $region6: #{tpu_custom_call.1} parent=1 // pred_check
      _
    $region7: #{tpu_custom_call.1} parent=1 // pred_check_branch
      %22 = sbr.rel (0) target = $region9
    $region8: #{tpu_custom_call.1} parent=1 // pred_region
      %s24 = ssub.s32 256, 256
      %25 = vsyncadd [#allocation6], %s24
      %s27 = sshll.u32 [#allocation5], 4
      %s28 = int_to_ptr.vmem [resolvable:$true] %s27
      %30 = dma.hbm_to_vmem [thread:$0]  %s1, 256, %s28, [#allocation6]
    $region9: #{tpu_custom_call.1} parent=1 // pred_fallthru
      _
    // Predicated region
    $region10: #{tpu_custom_call.1} parent=1 // pred_check
      _
    $region11: #{tpu_custom_call.1} parent=1 // pred_check_branch
      %32 = sbr.rel (0) target = $region13
    $region12: #{tpu_custom_call.1} parent=1 // pred_region
      %s34 = ssub.s32 256, 256
      %35 = vsyncadd [#allocation6], %s34
      %s37 = sshll.u32 [#allocation7], 4
      %s38 = int_to_ptr.vmem [resolvable:$true] %s37
      %40 = dma.hbm_to_vmem [thread:$0]  %s2, 256, %s38, [#allocation6]
    $region13: #{tpu_custom_call.1} parent=1 // pred_fallthru
      _
    // Predicated region
    $region14: #{tpu_custom_call.1} parent=1 // pred_check
      _
    $region15: #{tpu_custom_call.1} parent=1 // pred_check_branch
      %42 = sbr.rel (0) target = $region17
    $region16: #{tpu_custom_call.1} parent=1 // pred_region
      %43 = dma.done [#allocation3], 256
    $region17: #{tpu_custom_call.1} parent=1 // pred_fallthru
      _
    // Predicated region
    $region18: #{tpu_custom_call.1} parent=1 // pred_check
      _
    $region19: #{tpu_custom_call.1} parent=1 // pred_check_branch
      %45 = sbr.rel (0) target = $region21
    $region20: #{tpu_custom_call.1} parent=1 // pred_region
      %46 = dma.done [#allocation6], 256
    $region21: #{tpu_custom_call.1} parent=1 // pred_fallthru
      _
    // Predicated region
    $region22: #{tpu_custom_call.1} parent=1 // pred_check
      _
    $region23: #{tpu_custom_call.1} parent=1 // pred_check_branch
      %48 = sbr.rel (0) target = $region25
    $region24: #{tpu_custom_call.1} parent=1 // pred_region
      %49 = dma.done [#allocation6], 256
    $region25: #{tpu_custom_call.1} parent=1 // pred_fallthru
      _
    %v50 = vld [vmem:[#allocation2] sm:$0xff]
    %v51 = vld [vmem:[#allocation2 + $0x8] sm:$0xff]
    %v52 = vld [vmem:[#allocation5] sm:$0xff]
    %v53 = vld [vmem:[#allocation5 + $0x8] sm:$0xff]
    %v54 = vld [vmem:[#allocation7] sm:$0xff]
    %v55 = vld [vmem:[#allocation7 + $0x8] sm:$0xff]
    %v56 = vmul.f32 %v50, %v50
    %v57 = vmul.f32 %v51, %v51
    %v58 = vadd.f32 %v56, %v57
    %59 = vadd.xlane.f32.xlu0 %v58
    %v60 = vpop.xlane.xlu0 %59
    %v61 = vadd.f32 %v60, 0.0
    %v62 = vmul.f32 %v54, %v54
    %v63 = vmul.f32 %v55, %v55
    %v64 = vadd.f32 %v62, %v63
    %65 = vadd.xlane.f32.xlu0 %v64
    %v66 = vpop.xlane.xlu0 %65
    %v67 = vadd.f32 %v66, 0.0
    %v68 = vmul.f32 %v50, %v54
    %v69 = vmul.f32 %v51, %v55
    %v70 = vadd.f32 %v68, %v69
    %71 = vadd.xlane.f32.xlu0 %v70
    %v72 = vpop.xlane.xlu0 %71
    %v73 = vadd.f32 %v72, 0.0
    %v74 = vmul.f32 %v52, %v52
    %v75 = vmul.f32 %v53, %v53
    %v76 = vadd.f32 %v74, %v75
    %77 = vadd.xlane.f32.xlu0 %v76
    %v78 = vpop.xlane.xlu0 %77
    %v79 = vadd.f32 %v78, 0.0
    %v80 = vmul.f32 %v52, %v54
    %v81 = vmul.f32 %v53, %v55
    %v82 = vadd.f32 %v80, %v81
    %83 = vadd.xlane.f32.xlu0 %v82
    %v84 = vpop.xlane.xlu0 %83
    %v85 = vadd.f32 %v84, 0.0
    %v86 = vmax.f32 %v61, 1e-24
    %v87 = vrsqrt.pop %v86
    %v88 = vmax.f32 %v67, 1e-24
    %v89 = vrsqrt.pop %v88
    %v90 = vmul.f32 %v61, %v87
    %v91 = vmul.f32 %v90, %v87
    %v92 = vmul.f32 %v67, %v89
    %v93 = vmul.f32 %v92, %v89
    %v94 = vadd.f32 %v91, %v93
    %v95 = vmul.f32 %v73, 2.0
    %v96 = vmul.f32 %v95, %v87
    %v97 = vmul.f32 %v96, %v89
    %v98 = vsub.f32 %v94, %v97
    %v99 = vadd.f32 %v79, 1e-12
    %v100 = vadd.f32 %v67, 1e-12
    %v101 = vmul.f32 %v99, %v100
    %v102 = vrsqrt.pop %v101
    %v103 = vmul.f32 %v85, %v102
    %v104 = vsub.f32 1.0, %v103
    %vm105 = vcmask 7168
    %v106 = vsel %vm105, %v98, 0.0
    %107 = vadd.xlane.f32.xlu0 %v106
    %v108 = vpop.xlane.xlu0 %107
    %v109 = vrot.slane %v108, 4
    %v110 = vadd.f32 %v108, %v109
    %v111 = vrot.slane %v110, 2
    %v112 = vadd.f32 %v110, %v111
    %v113 = vrot.slane %v112, 1
    %v114 = vadd.f32 %v112, %v113
    %s115 = vtos %v114
    %v116 = vsel %vm105, %v104, 0.0
    %117 = vadd.xlane.f32.xlu0 %v116
    %v118 = vpop.xlane.xlu0 %117
    %v119 = vrot.slane %v118, 4
    %v120 = vadd.f32 %v118, %v119
    %v121 = vrot.slane %v120, 2
    %v122 = vadd.f32 %v120, %v121
    %v123 = vrot.slane %v122, 1
    %v124 = vadd.f32 %v122, %v123
    %s125 = vtos %v124
    %v126 = vlaneseq
    %v127 = vshrl.u32 %v126, 7
    %v128 = vlaneseq
    %v129 = vand.u32 %v128, 127
    %vm130 = vcmp.eq.s32.totalorder %v127, 0
    %vm131 = vcmp.eq.s32.totalorder %v129, 0
    %vm132 = vmand %vm130, %vm131
    %vm133 = vcmp.eq.s32.totalorder %v129, 1
    %vm134 = vmand %vm130, %vm133
    %v135 = vstv %s125
    %v136 = vsel %vm134, %v135, 0.0
    %v137 = vstv %s115
    %v138 = vsel %vm132, %v137, %v136
    %139 = vst [vmem:[#allocation8] sm:$0xff] %v138
    // Predicated region
    $region26: #{tpu_custom_call.1} parent=1 // pred_check
      _
    $region27: #{tpu_custom_call.1} parent=1 // pred_check_branch
      %141 = sbr.rel (0) target = $region29
    $region28: #{tpu_custom_call.1} parent=1 // pred_region
      %s143 = ssub.s32 128, 128
      %144 = vsyncadd [#allocation4], %s143
      %s146 = sshll.u32 [#allocation8], 4
      %s147 = int_to_ptr.vmem [resolvable:$true] %s146
      %149 = dma.vmem_to_hbm [thread:$0]  %s147, 128, %s3, [#allocation4]
    $region29: #{tpu_custom_call.1} parent=1 // pred_fallthru
      _
    // Predicated region
    $region30: #{tpu_custom_call.1} parent=1 // pred_check
      _
    $region31: #{tpu_custom_call.1} parent=1 // pred_check_branch
      %151 = sbr.rel (0) target = $region33
    $region32: #{tpu_custom_call.1} parent=1 // pred_region
      %152 = dma.done [#allocation4], 128
    $region33: #{tpu_custom_call.1} parent=1 // pred_fallthru
      _
    %153 = vsyncpa [#allocation3], 1
    %154 = vsyncpa [#allocation6], 1
    %155 = vsyncpa [#allocation4], 1

</llo_original>
